<compile_context>
chip_gen: v6e
topology: v6e:2x2x1
jax: 0.10.0
libtpu: 0.0.40
codegen_flags: <defaults>
</compile_context>

<pallas_src>
import math
import functools

import jax
import jax.numpy as jnp
import numpy as np
from jax.experimental import pallas as pl
from jax.experimental.pallas import tpu as pltpu


def _round_up(n, m):
    return ((n + m - 1) // m) * m


def _bias_offsets(H, LH, head_n):
    """Each bias segment starts on a 128-lane boundary (free static views)."""
    o1 = 0
    o2 = _round_up(H, 128)
    og = o2 + _round_up(H, 128)
    oh = og + _round_up(4 * LH, 128)
    total = oh + head_n
    return o1, o2, og, oh, total


def _slab_layout(IN, H, LH, head_n):
    """Row/col layout of the single packed weight slab (8-row / 128-lane aligned)."""
    r_w1 = 0                                  # w1: rows [0, IN),        cols [0, H)
    r_w2 = IN                                 # w2: rows [IN, IN+H),     cols [0, H)
    r_wg = _round_up(IN + H, 8)               # [W_ih; W_hh]: H+LH rows, cols [0, 4*LH)
    r_wh = r_wg + _round_up(H + LH, 8)        # [w_p | w_v | 0]: LH rows, cols [0, head_n)
    rows = r_wh + _round_up(LH, 8)
    cols = max(_round_up(H, 128), _round_up(4 * LH, 128), head_n)
    return r_w1, r_w2, r_wg, r_wh, rows, cols


# --------------------------------------------------------------------------
# Pallas kernel: one LSTM-policy step per grid index t.
#   shared MLP -> fused single-step LSTM cell -> fused (policy|value) head
# Weights/biases are VMEM-resident (constant index_maps); (h, c) lives in a
# persistent VMEM scratch, seeded from hx0 at t==0 and flushed at t==T-1.
# --------------------------------------------------------------------------
def _lstm_policy_kernel(
    x_ref, hx0_ref, w_ref, b_ref,          # inputs
    heads_ref, hxn_ref,                    # outputs
    state_ref,                             # VMEM scratch: [2, B, LH] (h, c)
    *, input_size, hidden, lstm_hidden, head_n, b_offs, row_offs,
):
    f32 = jnp.float32
    IN, H, LH = input_size, hidden, lstm_hidden
    G = 4 * LH
    o1, o2, og, oh = b_offs
    r_w1, r_w2, r_wg, r_wh = row_offs
    t = pl.program_id(0)

    # Seed the carried state from the hx0 input on the first step only.
    @pl.when(t == 0)
    def _():
        state_ref[...] = hx0_ref[...]

    wdt = w_ref.dtype                      # f32 or bf16 (MXU operand dtype)

    # Bias views (f32, 128-lane-aligned offsets).
    b1 = b_ref[:, o1:o1 + H]
    b2 = b_ref[:, o2:o2 + H]
    bg = b_ref[:, og:og + G]               # b_ih + b_hh, pre-added at pack time
    bh = b_ref[:, oh:oh + head_n]

    # Shared MLP: Linear+ReLU, Linear+ReLU (f32 accumulation, f32 elementwise).
    x = x_ref[0].astype(wdt)                                        # [B, IN]
    h1 = jnp.maximum(
        jnp.dot(x, w_ref[r_w1:r_w1 + IN, 0:H], preferred_element_type=f32) + b1, 0.0)
    h2 = jnp.maximum(
        jnp.dot(h1.astype(wdt), w_ref[r_w2:r_w2 + H, 0:H],
                preferred_element_type=f32) + b2, 0.0)

    # Single-step LSTM cell: one fused K = H + LH gate matmul on [h2 | h0].
    h0 = state_ref[0]                                               # [B, LH]
    c0 = state_ref[1]                                               # [B, LH]
    z = jnp.concatenate([h2, h0], axis=-1).astype(wdt)              # [B, H+LH]
    gates = jnp.dot(z, w_ref[r_wg:r_wg + H + LH, 0:G],
                    preferred_element_type=f32) + bg

    # PyTorch gate order: i, f, g, o (all elementwise/EUP math in f32).
    i_g = jax.nn.sigmoid(gates[:, 0 * LH:1 * LH])
    f_g = jax.nn.sigmoid(gates[:, 1 * LH:2 * LH])
    g_g = jnp.tanh(gates[:, 2 * LH:3 * LH])
    o_g = jax.nn.sigmoid(gates[:, 3 * LH:4 * LH])
    c_new = f_g * c0 + i_g * g_g
    h_new = o_g * jnp.tanh(c_new)

    # Carry state in VMEM scratch across grid steps.
    state_ref[0] = h_new
    state_ref[1] = c_new

    # Fused policy+value head; N padded to 128 -> full-lane unmasked store.
    heads_ref[0] = jnp.dot(h_new.astype(wdt), w_ref[r_wh:r_wh + LH, 0:head_n],
                           preferred_element_type=f32) + bh

    # Flush the final recurrent state once, on the last step.
    @pl.when(t == pl.num_programs(0) - 1)
    def _():
        hxn_ref[...] = state_ref[...]


# --------------------------------------------------------------------------
# Wrappers
# --------------------------------------------------------------------------
@functools.partial(jax.jit, static_argnames=("output_size",))
def lstm_policy_rollout(xs, hx0, packed, output_size):
    """Run T sequential LSTMPolicy.forward steps in one pallas_call.

    xs:  [T, B, IN] float32
    hx0: [2, B, LH] float32   (torch.stack([h, c]) layout — same as the output)
    Returns (policy [T,B,O], value [T,B,1], hx_final [2,B,LH]).
    """
    T, B, IN = xs.shape
    LH = hx0.shape[-1]
    H = LH  # heads are sized for hidden_size but fed lstm outputs (as in the module)
    O = output_size
    head_n = _round_up(O + 1, 128)
    G = 4 * LH
    r_w1, r_w2, r_wg, r_wh, rows, cols = _slab_layout(IN, H, LH, head_n)
    o1, o2, og, oh, btot = _bias_offsets(H, LH, head_n)

    kernel = functools.partial(
        _lstm_policy_kernel,
        input_size=IN, hidden=H, lstm_hidden=LH, head_n=head_n,
        b_offs=(o1, o2, og, oh), row_offs=(r_w1, r_w2, r_wg, r_wh),
    )

    # Advisory cost estimate so XLA can schedule surrounding driver ops.
    flops = 2 * T * B * (IN * H + H * H + (H + LH) * G + LH * head_n)
    trans = 5 * T * B * LH
    w_bytes = packed["w"].size * packed["w"].dtype.itemsize
    bytes_acc = (xs.size + 2 * hx0.size + packed["b"].size + T * B * head_n) * 4 + w_bytes

    heads, hx_new = pl.pallas_call(
        kernel,
        grid=(T,),
        out_shape=(
            jax.ShapeDtypeStruct((T, B, head_n), jnp.float32),  # [policy | value | pad]
            jax.ShapeDtypeStruct((2, B, LH), jnp.float32),      # stacked (h, c)
        ),
        in_specs=[
            pl.BlockSpec((1, B, IN), lambda t: (t, 0, 0)),      # x_t (per-step block)
            pl.BlockSpec((2, B, LH), lambda t: (0, 0, 0)),      # hx0 (resident)
            pl.BlockSpec((rows, cols), lambda t: (0, 0)),       # weight slab (resident)
            pl.BlockSpec((1, btot), lambda t: (0, 0)),          # biases (resident)
        ],
        out_specs=(
            pl.BlockSpec((1, B, head_n), lambda t: (t, 0, 0)),  # heads_t (per-step)
            pl.BlockSpec((2, B, LH), lambda t: (0, 0, 0)),      # final (h, c)
        ),
        scratch_shapes=[pltpu.VMEM((2, B, LH), jnp.float32)],   # carried (h, c)
        input_output_aliases={1: 1},                            # hx0 -> hx_new
        compiler_params=pltpu.CompilerParams(
            dimension_semantics=("arbitrary",)),                # sequential recurrence
        cost_estimate=pl.CostEstimate(
            flops=int(flops), transcendentals=int(trans),
            bytes_accessed=int(bytes_acc)),
    )(xs, hx0, packed["w"], packed["b"])

    policy = heads[..., :O]
    value = heads[..., O:O + 1]
    return policy, value, hx_new


def lstm_policy_forward(x, hx, packed, output_size):
    """Single-step forward matching LSTMPolicy.forward (T=1 rollout).

    Batched:     x [B, IN], hx [2, B, LH] -> (policy [B,O], value [B,1], hx' [2,B,LH])
    Un-batched:  x [IN],    hx [2, LH]    -> (policy [O],   value [1],   hx' [2,LH])
    State layout is [2, ...] = torch.stack([h, c]) — identical to what the
    module returns, so the output can be fed straight back in.
    """
    if x.ndim == 1:
        pol, val, hxn = lstm_policy_rollout(
            x[None, None, :], hx[:, None, :], packed, output_size)
        return pol[0, 0], val[0, 0], hxn[:, 0, :]
    pol, val, hxn = lstm_policy_rollout(x[None], hx, packed, output_size)
    return pol[0], val[0], hxn


# --------------------------------------------------------------------------
# Parameter init (PyTorch-style uniform(-1/sqrt(fan_in), +)) and packing.
# Weights are stored transposed: [in, out]; biases are 1-D.
# --------------------------------------------------------------------------
def init_params(key, input_size, output_size, hidden_size, lstm_hidden_size):
    assert hidden_size == lstm_hidden_size, \
        "heads take hidden_size inputs but are fed lstm outputs (as in the module)"

    def linear(key, fan_in, fan_out):
        k1, k2 = jax.random.split(key)
        bound = 1.0 / math.sqrt(fan_in)
        w = jax.random.uniform(k1, (fan_in, fan_out), jnp.float32, -bound, bound)
        b = jax.random.uniform(k2, (fan_out,), jnp.float32, -bound, bound)
        return w, b

    keys = jax.random.split(key, 6)
    w1, b1 = linear(keys[0], input_size, hidden_size)
    w2, b2 = linear(keys[1], hidden_size, hidden_size)
    bound = 1.0 / math.sqrt(lstm_hidden_size)
    k_ih, k_hh, kb_ih, kb_hh = jax.random.split(keys[2], 4)
    w_ih = jax.random.uniform(k_ih, (hidden_size, 4 * lstm_hidden_size), jnp.float32, -bound, bound)
    w_hh = jax.random.uniform(k_hh, (lstm_hidden_size, 4 * lstm_hidden_size), jnp.float32, -bound, bound)
    b_ih = jax.random.uniform(kb_ih, (4 * lstm_hidden_size,), jnp.float32, -bound, bound)
    b_hh = jax.random.uniform(kb_hh, (4 * lstm_hidden_size,), jnp.float32, -bound, bound)
    w_p, b_p = linear(keys[3], lstm_hidden_size, output_size)
    w_v, b_v = linear(keys[4], lstm_hidden_size, 1)
    return dict(w1=w1, b1=b1, w2=w2, b2=b2,
                w_ih=w_ih, b_ih=b_ih, w_hh=w_hh, b_hh=b_hh,
                w_p=w_p, b_p=b_p, w_v=w_v, b_v=b_v)


def pack_params(p, output_size, param_dtype=jnp.float32):
    """Pack all weights into one aligned slab (+ one f32 bias row).

    param_dtype=jnp.bfloat16 halves weight DMA bytes and uses bf16 MXU operands
    (precision tradeoff vs. the f32 reference); biases stay f32 always so all
    elementwise math remains f32.
    Padded head columns (O+1 .. head_n-1) MUST stay zero in both the slab and
    the bias tail — that is what makes the padded lanes of the head output inert.
    """
    IN, H = p["w1"].shape
    LH = p["w_hh"].shape[0]
    assert H == LH
    O = output_size
    head_n = _round_up(O + 1, 128)
    G = 4 * LH
    r_w1, r_w2, r_wg, r_wh, rows, cols = _slab_layout(IN, H, LH, head_n)

    slab = jnp.zeros((rows, cols), jnp.float32)
    slab = slab.at[r_w1:r_w1 + IN, :H].set(p["w1"])
    slab = slab.at[r_w2:r_w2 + H, :H].set(p["w2"])
    slab = slab.at[r_wg:r_wg + H, :G].set(p["w_ih"])
    slab = slab.at[r_wg + H:r_wg + H + LH, :G].set(p["w_hh"])
    slab = slab.at[r_wh:r_wh + LH, :O].set(p["w_p"])
    slab = slab.at[r_wh:r_wh + LH, O:O + 1].set(p["w_v"])
    slab = slab.astype(param_dtype)

    o1, o2, og, oh, total = _bias_offsets(H, LH, head_n)
    biases = jnp.zeros((1, total), jnp.float32)
    biases = biases.at[0, o1:o1 + H].set(p["b1"])
    biases = biases.at[0, o2:o2 + H].set(p["b2"])
    biases = biases.at[0, og:og + G].set(p["b_ih"] + p["b_hh"])     # pre-added
    biases = biases.at[0, oh:oh + O].set(p["b_p"])
    biases = biases.at[0, oh + O:oh + O + 1].set(p["b_v"])
    return dict(w=slab, b=biases)


# --------------------------------------------------------------------------
# Pure-JAX reference (mirrors the PyTorch batched branch exactly)
# --------------------------------------------------------------------------
def reference_step(x, h0, c0, p):
    h = jnp.maximum(x @ p["w1"] + p["b1"], 0.0)
    h = jnp.maximum(h @ p["w2"] + p["b2"], 0.0)
    gates = h @ p["w_ih"] + p["b_ih"] + h0 @ p["w_hh"] + p["b_hh"]
    LH = h0.shape[-1]
    i = jax.nn.sigmoid(gates[:, :LH])
    f = jax.nn.sigmoid(gates[:, LH:2 * LH])
    g = jnp.tanh(gates[:, 2 * LH:3 * LH])
    o = jax.nn.sigmoid(gates[:, 3 * LH:])
    c = f * c0 + i * g
    hn = o * jnp.tanh(c)
    return hn @ p["w_p"] + p["b_p"], hn @ p["w_v"] + p["b_v"], hn, c


def reference_rollout(xs, hx0, p):
    h, c = hx0[0], hx0[1]
    pols, vals = [], []
    for t in range(xs.shape[0]):
        pol, val, h, c = reference_step(xs[t], h, c, p)
        pols.append(pol)
        vals.append(val)
    return jnp.stack(pols), jnp.stack(vals), jnp.stack([h, c])


if __name__ == "__main__":
    B, T = 8, 6
    INPUT_SIZE = 16
    OUTPUT_SIZE = 4
    HIDDEN = 64
    LSTM_HIDDEN = 64  # must equal HIDDEN for the heads to typecheck (as in the module)

    key = jax.random.PRNGKey(0)
    kp, kx, kh = jax.random.split(key, 3)
    params = init_params(kp, INPUT_SIZE, OUTPUT_SIZE, HIDDEN, LSTM_HIDDEN)
    packed_f32 = pack_params(params, OUTPUT_SIZE, jnp.float32)
    packed_bf16 = pack_params(params, OUTPUT_SIZE, jnp.bfloat16)

    xs = jax.random.normal(kx, (T, B, INPUT_SIZE), jnp.float32)
    hx0 = jax.random.normal(kh, (2, B, LSTM_HIDDEN), jnp.float32)  # stack([h, c])

    # --- single step (the module's forward), f32 weights, tight tolerance ---
    pol, val, hxn = lstm_policy_forward(xs[0], hx0, packed_f32, output_size=OUTPUT_SIZE)
    jax.block_until_ready((pol, val, hxn))
    pol_r1, val_r1, hxn_r1 = reference_rollout(xs[:1], hx0, params)
    np.testing.assert_allclose(np.asarray(pol), np.asarray(pol_r1[0]), rtol=5e-5, atol=5e-5)
    np.testing.assert_allclose(np.asarray(val), np.asarray(val_r1[0]), rtol=5e-5, atol=5e-5)
    np.testing.assert_allclose(np.asarray(hxn), np.asarray(hxn_r1), rtol=5e-5, atol=5e-5)

    # --- T-step rollout in one pallas_call, f32 weights ---
    pol_s, val_s, hx_f = lstm_policy_rollout(xs, hx0, packed_f32, output_size=OUTPUT_SIZE)
    jax.block_until_ready((pol_s, val_s, hx_f))
    pol_rr, val_rr, hx_rr = reference_rollout(xs, hx0, params)
    np.testing.assert_allclose(np.asarray(pol_s), np.asarray(pol_rr), rtol=5e-4, atol=5e-4)
    np.testing.assert_allclose(np.asarray(val_s), np.asarray(val_rr), rtol=5e-4, atol=5e-4)
    np.testing.assert_allclose(np.asarray(hx_f), np.asarray(hx_rr), rtol=5e-4, atol=5e-4)

    # --- bf16 weight slab (intentional precision tradeoff -> loose tolerance) ---
    pol_b, val_b, hx_b = lstm_policy_rollout(xs, hx0, packed_bf16, output_size=OUTPUT_SIZE)
    jax.block_until_ready((pol_b, val_b, hx_b))
    np.testing.assert_allclose(np.asarray(pol_b), np.asarray(pol_rr), rtol=1e-1, atol=1e-1)
    np.testing.assert_allclose(np.asarray(val_b), np.asarray(val_rr), rtol=1e-1, atol=1e-1)
    np.testing.assert_allclose(np.asarray(hx_b), np.asarray(hx_rr), rtol=1e-1, atol=1e-1)

    print("KERNEL_OK")
</pallas_src>

<mosaic_0001>
module attributes {stable_mosaic.version = 11 : i64} {
  func.func @_lstm_policy_kernel(%arg0: i32, %arg1: memref<1x8x16xf32, #tpu.memory_space<vmem>>, %arg2: memref<2x8x64xf32, #tpu.memory_space<vmem>>, %arg3: memref<272x256xf32, #tpu.memory_space<vmem>>, %arg4: memref<1x640xf32, #tpu.memory_space<vmem>>, %arg5: memref<1x8x128xf32, #tpu.memory_space<vmem>>, %arg6: memref<2x8x64xf32, #tpu.memory_space<vmem>>, %arg7: memref<2x8x64xf32, #tpu.memory_space<vmem>>) attributes {dimension_semantics = [#tpu.dimension_semantics<arbitrary>], iteration_bounds = array<i64: 1>, scalar_prefetch = 0 : i64, scratch_operands = 1 : i64, tpu.core_type = #tpu.core_type<tc>, window_params = [{transform_indices = @transform_0, window_bounds = array<i64: 1, 8, 16>}, {pipeline_mode = #tpu.pipeline_mode<synchronous>, transform_indices = @transform_1, window_bounds = array<i64: 2, 8, 64>}, {pipeline_mode = #tpu.pipeline_mode<synchronous>, transform_indices = @transform_2, window_bounds = array<i64: 272, 256>}, {pipeline_mode = #tpu.pipeline_mode<synchronous>, transform_indices = @transform_3, window_bounds = array<i64: 1, 640>}, {transform_indices = @transform_4, window_bounds = array<i64: 1, 8, 128>}, {pipeline_mode = #tpu.pipeline_mode<synchronous>, transform_indices = @transform_5, window_bounds = array<i64: 2, 8, 64>}]} {
    %c0_i32 = arith.constant 0 : i32
    %0 = arith.cmpi eq, %arg0, %c0_i32 : i32
    %1 = arith.extui %0 : i1 to i32
    %c0_i32_0 = arith.constant 0 : i32
    %2 = arith.cmpi ne, %1, %c0_i32_0 : i32
    scf.if %2 {
      %c0_37 = arith.constant 0 : index
      %c0_38 = arith.constant 0 : index
      %c0_39 = arith.constant 0 : index
      %71 = vector.load %arg2[%c0_37, %c0_38, %c0_39] : memref<2x8x64xf32, #tpu.memory_space<vmem>>, vector<2x8x64xf32>
      %c0_40 = arith.constant 0 : index
      %c0_41 = arith.constant 0 : index
      %c0_42 = arith.constant 0 : index
      %72 = vector.load %arg7[%c0_40, %c0_41, %c0_42] : memref<2x8x64xf32, #tpu.memory_space<vmem>>, vector<2x8x64xf32>
      tpu.vector_store %arg7[%c0_40, %c0_41, %c0_42], %71 {strides = array<i32>} : memref<2x8x64xf32, #tpu.memory_space<vmem>>, vector<2x8x64xf32>,
    } else {
    }
    %c0 = arith.constant 0 : index
    %c0_1 = arith.constant 0 : index
    %3 = vector.load %arg4[%c0, %c0_1] : memref<1x640xf32, #tpu.memory_space<vmem>>, vector<1x64xf32>
    %c0_2 = arith.constant 0 : index
    %c128 = arith.constant 128 : index
    %4 = vector.load %arg4[%c0_2, %c128] : memref<1x640xf32, #tpu.memory_space<vmem>>, vector<1x64xf32>
    %c0_3 = arith.constant 0 : index
    %c256 = arith.constant 256 : index
    %5 = vector.load %arg4[%c0_3, %c256] : memref<1x640xf32, #tpu.memory_space<vmem>>, vector<1x256xf32>
    %c0_4 = arith.constant 0 : index
    %c512 = arith.constant 512 : index
    %6 = vector.load %arg4[%c0_4, %c512] : memref<1x640xf32, #tpu.memory_space<vmem>>, vector<1x128xf32>
    %c0_5 = arith.constant 0 : index
    %c0_6 = arith.constant 0 : index
    %c0_7 = arith.constant 0 : index
    %7 = vector.load %arg1[%c0_5, %c0_6, %c0_7] : memref<1x8x16xf32, #tpu.memory_space<vmem>>, vector<1x8x16xf32>
    %8 = vector.shape_cast %7 : vector<1x8x16xf32> to vector<8x16xf32>
    %c0_8 = arith.constant 0 : index
    %c0_9 = arith.constant 0 : index
    %9 = vector.load %arg3[%c0_8, %c0_9] : memref<272x256xf32, #tpu.memory_space<vmem>>, vector<16x64xf32>
    %cst = arith.constant dense<0.000000e+00> : vector<8x64xf32>
    %10 = tpu.matmul %8, %9, %cst {dimension_numbers = #tpu.dot_dimension_numbers<[1], [0], [0], [1], [0, 0, 1, 1], [], []>} : vector<8x16xf32>, vector<16x64xf32>, vector<8x64xf32> -> vector<8x64xf32>
    %11 = vector.broadcast %3 : vector<1x64xf32> to vector<8x64xf32>
    %12 = arith.addf %10, %11 : vector<8x64xf32>
    %cst_10 = arith.constant 0.000000e+00 : f32
    %13 = vector.broadcast %cst_10 : f32 to vector<8x64xf32>
    %14 = arith.maximumf %12, %13 : vector<8x64xf32>
    %c16 = arith.constant 16 : index
    %c0_11 = arith.constant 0 : index
    %15 = vector.load %arg3[%c16, %c0_11] : memref<272x256xf32, #tpu.memory_space<vmem>>, vector<64x64xf32>
    %cst_12 = arith.constant dense<0.000000e+00> : vector<8x64xf32>
    %16 = tpu.matmul %14, %15, %cst_12 {dimension_numbers = #tpu.dot_dimension_numbers<[1], [0], [0], [1], [0, 0, 1, 1], [], []>} : vector<8x64xf32>, vector<64x64xf32>, vector<8x64xf32> -> vector<8x64xf32>
    %17 = vector.broadcast %4 : vector<1x64xf32> to vector<8x64xf32>
    %18 = arith.addf %16, %17 : vector<8x64xf32>
    %cst_13 = arith.constant 0.000000e+00 : f32
    %19 = vector.broadcast %cst_13 : f32 to vector<8x64xf32>
    %20 = arith.maximumf %18, %19 : vector<8x64xf32>
    %c0_14 = arith.constant 0 : index
    %c0_15 = arith.constant 0 : index
    %c0_16 = arith.constant 0 : index
    %21 = vector.load %arg7[%c0_14, %c0_15, %c0_16] : memref<2x8x64xf32, #tpu.memory_space<vmem>>, vector<1x8x64xf32>
    %22 = vector.shape_cast %21 : vector<1x8x64xf32> to vector<8x64xf32>
    %c1 = arith.constant 1 : index
    %c0_17 = arith.constant 0 : index
    %c0_18 = arith.constant 0 : index
    %23 = vector.load %arg7[%c1, %c0_17, %c0_18] : memref<2x8x64xf32, #tpu.memory_space<vmem>>, vector<1x8x64xf32>
    %24 = vector.shape_cast %23 : vector<1x8x64xf32> to vector<8x64xf32>
    %25 = tpu.concatenate %20, %22 in 1 : vector<8x64xf32>, vector<8x64xf32> -> vector<8x128xf32>
    %c80 = arith.constant 80 : index
    %c0_19 = arith.constant 0 : index
    %26 = vector.load %arg3[%c80, %c0_19] : memref<272x256xf32, #tpu.memory_space<vmem>>, vector<128x256xf32>
    %cst_20 = arith.constant dense<0.000000e+00> : vector<8x256xf32>
    %27 = tpu.matmul %25, %26, %cst_20 {dimension_numbers = #tpu.dot_dimension_numbers<[1], [0], [0], [1], [0, 0, 1, 1], [], []>} : vector<8x128xf32>, vector<128x256xf32>, vector<8x256xf32> -> vector<8x256xf32>
    %28 = vector.broadcast %5 : vector<1x256xf32> to vector<8x256xf32>
    %29 = arith.addf %27, %28 : vector<8x256xf32>
    %30 = vector.extract_strided_slice %29 {offsets = [0, 0], sizes = [8, 64], strides = [1, 1]} : vector<8x256xf32> to vector<8x64xf32>
    %31 = arith.negf %30 : vector<8x64xf32>
    %32 = math.exp %31 : vector<8x64xf32>
    %cst_21 = arith.constant 1.000000e+00 : f32
    %33 = vector.broadcast %cst_21 : f32 to vector<8x64xf32>
    %34 = arith.addf %33, %32 : vector<8x64xf32>
    %35 = arith.divf %33, %34 : vector<8x64xf32>
    %36 = vector.extract_strided_slice %29 {offsets = [0, 64], sizes = [8, 64], strides = [1, 1]} : vector<8x256xf32> to vector<8x64xf32>
    %37 = arith.negf %36 : vector<8x64xf32>
    %38 = math.exp %37 : vector<8x64xf32>
    %cst_22 = arith.constant 1.000000e+00 : f32
    %39 = vector.broadcast %cst_22 : f32 to vector<8x64xf32>
    %40 = arith.addf %39, %38 : vector<8x64xf32>
    %41 = arith.divf %39, %40 : vector<8x64xf32>
    %42 = vector.extract_strided_slice %29 {offsets = [0, 128], sizes = [8, 64], strides = [1, 1]} : vector<8x256xf32> to vector<8x64xf32>
    %43 = math.tanh %42 : vector<8x64xf32>
    %44 = vector.extract_strided_slice %29 {offsets = [0, 192], sizes = [8, 64], strides = [1, 1]} : vector<8x256xf32> to vector<8x64xf32>
    %45 = arith.negf %44 : vector<8x64xf32>
    %46 = math.exp %45 : vector<8x64xf32>
    %cst_23 = arith.constant 1.000000e+00 : f32
    %47 = vector.broadcast %cst_23 : f32 to vector<8x64xf32>
    %48 = arith.addf %47, %46 : vector<8x64xf32>
    %49 = arith.divf %47, %48 : vector<8x64xf32>
    %50 = arith.mulf %41, %24 : vector<8x64xf32>
    %51 = arith.mulf %35, %43 : vector<8x64xf32>
    %52 = arith.addf %50, %51 : vector<8x64xf32>
    %53 = math.tanh %52 : vector<8x64xf32>
    %54 = arith.mulf %49, %53 : vector<8x64xf32>
    %c0_24 = arith.constant 0 : index
    %c0_25 = arith.constant 0 : index
    %c0_26 = arith.constant 0 : index
    %55 = vector.load %arg7[%c0_24, %c0_25, %c0_26] : memref<2x8x64xf32, #tpu.memory_space<vmem>>, vector<1x8x64xf32>
    %56 = vector.shape_cast %55 : vector<1x8x64xf32> to vector<8x64xf32>
    %57 = vector.shape_cast %54 : vector<8x64xf32> to vector<1x8x64xf32>
    tpu.vector_store %arg7[%c0_24, %c0_25, %c0_26], %57 {strides = array<i32>} : memref<2x8x64xf32, #tpu.memory_space<vmem>>, vector<1x8x64xf32>,
    %c1_27 = arith.constant 1 : index
    %c0_28 = arith.constant 0 : index
    %c0_29 = arith.constant 0 : index
    %58 = vector.load %arg7[%c1_27, %c0_28, %c0_29] : memref<2x8x64xf32, #tpu.memory_space<vmem>>, vector<1x8x64xf32>
    %59 = vector.shape_cast %58 : vector<1x8x64xf32> to vector<8x64xf32>
    %60 = vector.shape_cast %52 : vector<8x64xf32> to vector<1x8x64xf32>
    tpu.vector_store %arg7[%c1_27, %c0_28, %c0_29], %60 {strides = array<i32>} : memref<2x8x64xf32, #tpu.memory_space<vmem>>, vector<1x8x64xf32>,
    %c208 = arith.constant 208 : index
    %c0_30 = arith.constant 0 : index
    %61 = vector.load %arg3[%c208, %c0_30] : memref<272x256xf32, #tpu.memory_space<vmem>>, vector<64x128xf32>
    %cst_31 = arith.constant dense<0.000000e+00> : vector<8x128xf32>
    %62 = tpu.matmul %54, %61, %cst_31 {dimension_numbers = #tpu.dot_dimension_numbers<[1], [0], [0], [1], [0, 0, 1, 1], [], []>} : vector<8x64xf32>, vector<64x128xf32>, vector<8x128xf32> -> vector<8x128xf32>
    %63 = vector.broadcast %6 : vector<1x128xf32> to vector<8x128xf32>
    %64 = arith.addf %62, %63 : vector<8x128xf32>
    %c0_32 = arith.constant 0 : index
    %c0_33 = arith.constant 0 : index
    %c0_34 = arith.constant 0 : index
    %65 = vector.load %arg5[%c0_32, %c0_33, %c0_34] : memref<1x8x128xf32, #tpu.memory_space<vmem>>, vector<1x8x128xf32>
    %66 = vector.shape_cast %65 : vector<1x8x128xf32> to vector<8x128xf32>
    %67 = vector.shape_cast %64 : vector<8x128xf32> to vector<1x8x128xf32>
    tpu.vector_store %arg5[%c0_32, %c0_33, %c0_34], %67 {strides = array<i32>} : memref<1x8x128xf32, #tpu.memory_space<vmem>>, vector<1x8x128xf32>,
    %c0_i32_35 = arith.constant 0 : i32
    %68 = arith.cmpi eq, %arg0, %c0_i32_35 : i32
    %69 = arith.extui %68 : i1 to i32
    %c0_i32_36 = arith.constant 0 : i32
    %70 = arith.cmpi ne, %69, %c0_i32_36 : i32
    scf.if %70 {
      %c0_37 = arith.constant 0 : index
      %c0_38 = arith.constant 0 : index
      %c0_39 = arith.constant 0 : index
      %71 = vector.load %arg7[%c0_37, %c0_38, %c0_39] : memref<2x8x64xf32, #tpu.memory_space<vmem>>, vector<2x8x64xf32>
      %c0_40 = arith.constant 0 : index
      %c0_41 = arith.constant 0 : index
      %c0_42 = arith.constant 0 : index
      %72 = vector.load %arg6[%c0_40, %c0_41, %c0_42] : memref<2x8x64xf32, #tpu.memory_space<vmem>>, vector<2x8x64xf32>
      tpu.vector_store %arg6[%c0_40, %c0_41, %c0_42], %71 {strides = array<i32>} : memref<2x8x64xf32, #tpu.memory_space<vmem>>, vector<2x8x64xf32>,
    } else {
    }
    return
  }
  func.func @transform_0(%arg0: i32) -> (i32, i32, i32) {
    %c0_i32 = arith.constant 0 : i32
    %c0_i32_0 = arith.constant 0 : i32
    %c0_i32_1 = arith.constant 0 : i32
    return %arg0, %c0_i32, %c0_i32_0 : i32, i32, i32
  }
  func.func @transform_1(%arg0: i32) -> (i32, i32, i32) {
    %c0_i32 = arith.constant 0 : i32
    %c0_i32_0 = arith.constant 0 : i32
    %c0_i32_1 = arith.constant 0 : i32
    %c0_i32_2 = arith.constant 0 : i32
    return %c0_i32, %c0_i32_0, %c0_i32_1 : i32, i32, i32
  }
  func.func @transform_2(%arg0: i32) -> (i32, i32) {
    %c0_i32 = arith.constant 0 : i32
    %c0_i32_0 = arith.constant 0 : i32
    %c0_i32_1 = arith.constant 0 : i32
    return %c0_i32, %c0_i32_0 : i32, i32
  }
  func.func @transform_3(%arg0: i32) -> (i32, i32) {
    %c0_i32 = arith.constant 0 : i32
    %c0_i32_0 = arith.constant 0 : i32
    %c0_i32_1 = arith.constant 0 : i32
    return %c0_i32, %c0_i32_0 : i32, i32
  }
  func.func @transform_4(%arg0: i32) -> (i32, i32, i32) {
    %c0_i32 = arith.constant 0 : i32
    %c0_i32_0 = arith.constant 0 : i32
    %c0_i32_1 = arith.constant 0 : i32
    return %arg0, %c0_i32, %c0_i32_0 : i32, i32, i32
  }
  func.func @transform_5(%arg0: i32) -> (i32, i32, i32) {
    %c0_i32 = arith.constant 0 : i32
    %c0_i32_0 = arith.constant 0 : i32
    %c0_i32_1 = arith.constant 0 : i32
    %c0_i32_2 = arith.constant 0 : i32
    return %c0_i32, %c0_i32_0, %c0_i32_1 : i32, i32, i32
  }
}

</mosaic_0001>

<llo_original>
// kernel: lstm_policy_rollout.1
$region0: #{lstm_policy_rollout.1}
  #allocation0 [shape = 'u32[]', space=smem, size = 0x4, offset = 0x4, fixed_abs, tag = 'smem constant byte address 0x4 - core index']
  #allocation1 [shape = 'u32[144,128]{1,0:T(1,128)}', space=vmem, size = 0x12000, scoped, tag = 'internal scratch']
  #allocation2 [shape = 'f32[2,8,64]{2,1,0:T(8,128)}', space=vmem, size = 0x2000, scoped, tag = 'scratch operand']
  %s0 = inlined_call_operand.vmem [shape: f32[1,8,16], index: 0, kind: input, shape index: {}]
  %s1 = inlined_call_operand.vmem [shape: f32[2,8,64], index: 1, kind: input, shape index: {}, may-alias: {1,5}]
  %s2 = inlined_call_operand.hbm [shape: f32[272,256], index: 2, kind: input, shape index: {}]
  %s3 = inlined_call_operand.vmem [shape: f32[1,640], index: 3, kind: input, shape index: {}]
  %s4 = inlined_call_operand.vmem [shape: f32[1,8,128], index: 4, kind: output, shape index: {0}]
  %s5 = inlined_call_operand.vmem [shape: f32[2,8,64], index: 5, kind: output, shape index: {1}, may-alias: {1,5}]
  %6 = xla_tuple %s4, %s5
  %s7 = sld [smem:[#allocation0]]
  $region46: #{lstm_policy_rollout.1} parent=0
    _
  %s9 = ssub.s32 1, %s7
  %s10 = scalar_select 0, %s9, %s7
  $region1: #{lstm_policy_rollout.1} parent=0
    #allocation3 [shape = 'u8[278528]{0}', space=vmem, size = 0x44000, scoped, tag = 'input window, operand 2, single buffered']
    #allocation4 [shape = 's32[1]{0}', space=sflag, size = 0x4, scoped, tag = 'scoped memory for lstm_policy_rollout.1']
    %11 = vsyncpa [#allocation4], 0
    // Predicated region
    $region2: #{lstm_policy_rollout.1} parent=1 // pred_check
      _
    $region3: #{lstm_policy_rollout.1} parent=1 // pred_check_branch
      %13 = sbr.rel (0) target = $region5
    $region4: #{lstm_policy_rollout.1} parent=1 // pred_region
      _
    $region5: #{lstm_policy_rollout.1} parent=1 // pred_fallthru
      _
    // Predicated region
    $region6: #{lstm_policy_rollout.1} parent=1 // pred_check
      _
    $region7: #{lstm_policy_rollout.1} parent=1 // pred_check_branch
      %15 = sbr.rel (0) target = $region9
    $region8: #{lstm_policy_rollout.1} parent=1 // pred_region
      _
    $region9: #{lstm_policy_rollout.1} parent=1 // pred_fallthru
      _
    // Predicated region
    $region10: #{lstm_policy_rollout.1} parent=1 // pred_check
      _
    $region11: #{lstm_policy_rollout.1} parent=1 // pred_check_branch
      %17 = sbr.rel (0) target = $region13
    $region12: #{lstm_policy_rollout.1} parent=1 // pred_region
      %s19 = ssub.s32 8704, 8704
      %20 = vsyncadd [#allocation4], %s19
      %s21 = sshll.u32 [#allocation3], 4
      %s22 = int_to_ptr.vmem [resolvable:$true] %s21
      %27 = dma.hbm_to_vmem [thread:$0]  %s2, 8704, %s22, [#allocation4], 256, 256, 16
    $region13: #{lstm_policy_rollout.1} parent=1 // pred_fallthru
      _
    // Predicated region
    $region14: #{lstm_policy_rollout.1} parent=1 // pred_check
      _
    $region15: #{lstm_policy_rollout.1} parent=1 // pred_check_branch
      %29 = sbr.rel (0) target = $region17
    $region16: #{lstm_policy_rollout.1} parent=1 // pred_region
      _
    $region17: #{lstm_policy_rollout.1} parent=1 // pred_fallthru
      _
    // Predicated region
    $region18: #{lstm_policy_rollout.1} parent=1 // pred_check
      _
    $region19: #{lstm_policy_rollout.1} parent=1 // pred_check_branch
      %31 = sbr.rel (0) target = $region21
    $region20: #{lstm_policy_rollout.1} parent=1 // pred_region
      %32 = dma.done [#allocation4], 8704
    $region21: #{lstm_policy_rollout.1} parent=1 // pred_fallthru
      _
    %p33 = scmp.eq.s32.totalorder 0, 0
    // Predicated region
    $region22: #{lstm_policy_rollout.1} parent=1 // pred_check
      %p34 = pneg %p33
    $region23: #{lstm_policy_rollout.1} parent=1 // pred_check_branch
      %36 = sbr.rel (%p34) target = $region25
    $region24: #{lstm_policy_rollout.1} parent=1 // pred_region
      %v37 = vld [vmem:[%s1] sm:$0xff]
      %v38 = vld [vmem:[%s1 + $0x8] sm:$0xff]
      %vm39 = vcmask 523264
      %40 = vst.msk [vmem:[#allocation2] sm:$0xff] %vm39, %v37
      %41 = vst.msk [vmem:[#allocation2 + $0x8] sm:$0xff] %vm39, %v38
    $region25: #{lstm_policy_rollout.1} parent=1 // pred_fallthru
      _
    %v42 = vld [vmem:[%s3] sm:$0x1]
    %v43 = vld [vmem:[%s3 + $0x1] sm:$0x1]
    %v44 = vld [vmem:[%s3 + $0x2] sm:$0x3]
    %v45 = vld [vmem:[%s3 + $0x4] sm:$0x1]
    %v46 = vld [vmem:[%s0] sm:$0xff]
    %v47 = vld [vmem:[#allocation3] sm:$0xff]
    %v48 = vld [vmem:[#allocation3 + $0x10] sm:$0xff]
    %v50 = vlaneseq
    %v51 = vshrl.u32 %v50, 7
    %v52 = vsub.s32 0, %v51
    %v53 = vrot.slane %v42, %v52
    %vm55 = vcmask 130048
    %v57 = vsel %vm55, %v46, 0
    %59 = vmatprep.subr.mxu0 0.0
    %60 = vmatpush1.msra.mxu0 0.0
    %61 = vmatprep.subr.mxu0 0.0
    %62 = vmatpush1.msra.mxu0 0.0
    %63 = vmatprep.subr.mxu0 0.0
    %64 = vmatpush1.msra.mxu0 0.0
    %65 = vmatprep.subr.mxu0 0.0
    %66 = vmatpush1.msra.mxu0 0.0
    %67 = vmatprep.subr.mxu0 0.0
    %68 = vmatpush1.msra.mxu0 0.0
    %69 = vmatprep.subr.mxu0 0.0
    %70 = vmatpush1.msra.mxu0 0.0
    %71 = vmatprep.subr.mxu0 0.0
    %72 = vmatpush1.msra.mxu0 0.0
    %73 = vmatprep.subr.mxu0 0.0
    %74 = vmatpush1.msra.mxu0 0.0
    %75 = vmatprep.subr.mxu0 0.0
    %76 = vmatpush1.msra.mxu0 0.0
    %77 = vmatprep.subr.mxu0 0.0
    %78 = vmatpush1.msra.mxu0 0.0
    %79 = vmatprep.subr.mxu0 0.0
    %80 = vmatpush1.msra.mxu0 0.0
    %81 = vmatprep.subr.mxu0 0.0
    %82 = vmatpush1.msra.mxu0 0.0
    %83 = vmatprep.subr.mxu0 0.0
    %84 = vmatpush1.msra.mxu0 0.0
    %85 = vmatprep.subr.mxu0 0.0
    %86 = vmatpush1.msra.mxu0 0.0
    %87 = vmatprep.subr.mxu0 0.0
    %88 = vmatpush1.msra.mxu0 %v48
    %89 = vmatprep.subr.mxu0 0.0
    %90 = vmatpush1.msra.mxu0 %v47
    %91 = vmatprep.subr.mxu0 0.0
    %92 = vmatpush2.msra.mxu0 0.0
    %93 = vmatprep.subr.mxu0 0.0
    %94 = vmatpush2.msra.mxu0 0.0
    %95 = vmatprep.subr.mxu0 0.0
    %96 = vmatpush2.msra.mxu0 0.0
    %97 = vmatprep.subr.mxu0 0.0
    %98 = vmatpush2.msra.mxu0 0.0
    %99 = vmatprep.subr.mxu0 0.0
    %100 = vmatpush2.msra.mxu0 0.0
    %101 = vmatprep.subr.mxu0 0.0
    %102 = vmatpush2.msra.mxu0 0.0
    %103 = vmatprep.subr.mxu0 0.0
    %104 = vmatpush2.msra.mxu0 0.0
    %105 = vmatprep.subr.mxu0 0.0
    %106 = vmatpush2.msra.mxu0 0.0
    %107 = vmatprep.subr.mxu0 0.0
    %108 = vmatpush2.msra.mxu0 0.0
    %109 = vmatprep.subr.mxu0 0.0
    %110 = vmatpush2.msra.mxu0 0.0
    %111 = vmatprep.subr.mxu0 0.0
    %112 = vmatpush2.msra.mxu0 0.0
    %113 = vmatprep.subr.mxu0 0.0
    %114 = vmatpush2.msra.mxu0 0.0
    %115 = vmatprep.subr.mxu0 0.0
    %116 = vmatpush2.msra.mxu0 0.0
    %117 = vmatprep.subr.mxu0 0.0
    %118 = vmatpush2.msra.mxu0 0.0
    %119 = vmatprep.subr.mxu0 0.0
    %120 = vmatpush2.msra.mxu0 0.0
    %121 = vmatprep.subr.mxu0 0.0
    %122 = vmatpush2.msra.mxu0 0.0
    %123 = vmatprep.mubr.f32.mxu0 0.0
    %124 = vmatmul.mubr.f32.gmra.mxu0 %v57
    %v125 = vpop.f32.mrf.mxu0
    %v126 = vadd.f32 %v53, %v125
    %v127 = vpop.f32.mrf.mxu0
    %128 = vdwg.mxu0
    %v129 = vmax.f32 %v126, 0.0
    %v130 = vld [vmem:[#allocation3 + $0x20] sm:$0xff]
    %v131 = vld [vmem:[#allocation3 + $0x30] sm:$0xff]
    %v132 = vld [vmem:[#allocation3 + $0x40] sm:$0xff]
    %v133 = vld [vmem:[#allocation3 + $0x50] sm:$0xff]
    %v134 = vld [vmem:[#allocation3 + $0x60] sm:$0xff]
    %v135 = vld [vmem:[#allocation3 + $0x70] sm:$0xff]
    %v136 = vld [vmem:[#allocation3 + $0x80] sm:$0xff]
    %v137 = vld [vmem:[#allocation3 + $0x90] sm:$0xff]
    %v139 = vlaneseq
    %v140 = vshrl.u32 %v139, 7
    %v141 = vsub.s32 0, %v140
    %v142 = vrot.slane %v43, %v141
    %vm144 = vcmask 523264
    %v146 = vsel %vm144, %v129, 0
    %148 = vmatprep.subr.mxu0 0.0
    %149 = vmatpush1.msra.mxu0 0.0
    %150 = vmatprep.subr.mxu0 0.0
    %151 = vmatpush1.msra.mxu0 0.0
    %152 = vmatprep.subr.mxu0 0.0
    %153 = vmatpush1.msra.mxu0 0.0
    %154 = vmatprep.subr.mxu0 0.0
    %155 = vmatpush1.msra.mxu0 0.0
    %156 = vmatprep.subr.mxu0 0.0
    %157 = vmatpush1.msra.mxu0 0.0
    %158 = vmatprep.subr.mxu0 0.0
    %159 = vmatpush1.msra.mxu0 0.0
    %160 = vmatprep.subr.mxu0 0.0
    %161 = vmatpush1.msra.mxu0 0.0
    %162 = vmatprep.subr.mxu0 0.0
    %163 = vmatpush1.msra.mxu0 0.0
    %164 = vmatprep.subr.mxu0 0.0
    %165 = vmatpush1.msra.mxu0 %v137
    %166 = vmatprep.subr.mxu0 0.0
    %167 = vmatpush1.msra.mxu0 %v136
    %168 = vmatprep.subr.mxu0 0.0
    %169 = vmatpush1.msra.mxu0 %v135
    %170 = vmatprep.subr.mxu0 0.0
    %171 = vmatpush1.msra.mxu0 %v134
    %172 = vmatprep.subr.mxu0 0.0
    %173 = vmatpush1.msra.mxu0 %v133
    %174 = vmatprep.subr.mxu0 0.0
    %175 = vmatpush1.msra.mxu0 %v132
    %176 = vmatprep.subr.mxu0 0.0
    %177 = vmatpush1.msra.mxu0 %v131
    %178 = vmatprep.subr.mxu0 0.0
    %179 = vmatpush1.msra.mxu0 %v130
    %180 = vmatprep.subr.mxu0 0.0
    %181 = vmatpush2.msra.mxu0 0.0
    %182 = vmatprep.subr.mxu0 0.0
    %183 = vmatpush2.msra.mxu0 0.0
    %184 = vmatprep.subr.mxu0 0.0
    %185 = vmatpush2.msra.mxu0 0.0
    %186 = vmatprep.subr.mxu0 0.0
    %187 = vmatpush2.msra.mxu0 0.0
    %188 = vmatprep.subr.mxu0 0.0
    %189 = vmatpush2.msra.mxu0 0.0
    %190 = vmatprep.subr.mxu0 0.0
    %191 = vmatpush2.msra.mxu0 0.0
    %192 = vmatprep.subr.mxu0 0.0
    %193 = vmatpush2.msra.mxu0 0.0
    %194 = vmatprep.subr.mxu0 0.0
    %195 = vmatpush2.msra.mxu0 0.0
    %196 = vmatprep.subr.mxu0 0.0
    %197 = vmatpush2.msra.mxu0 0.0
    %198 = vmatprep.subr.mxu0 0.0
    %199 = vmatpush2.msra.mxu0 0.0
    %200 = vmatprep.subr.mxu0 0.0
    %201 = vmatpush2.msra.mxu0 0.0
    %202 = vmatprep.subr.mxu0 0.0
    %203 = vmatpush2.msra.mxu0 0.0
    %204 = vmatprep.subr.mxu0 0.0
    %205 = vmatpush2.msra.mxu0 0.0
    %206 = vmatprep.subr.mxu0 0.0
    %207 = vmatpush2.msra.mxu0 0.0
    %208 = vmatprep.subr.mxu0 0.0
    %209 = vmatpush2.msra.mxu0 0.0
    %210 = vmatprep.subr.mxu0 0.0
    %211 = vmatpush2.msra.mxu0 0.0
    %212 = vmatprep.mubr.f32.mxu0 0.0
    %213 = vmatmul.mubr.f32.gmra.mxu0 %v146
    %v214 = vpop.f32.mrf.mxu0
    %v215 = vadd.f32 %v142, %v214
    %v216 = vpop.f32.mrf.mxu0
    %217 = vdwg.mxu0
    %v218 = vmax.f32 %v215, 0.0
    %v219 = vld [vmem:[#allocation2] sm:$0xff]
    %s220 = scalar_lea.vmem [#allocation2], 8
    %v221 = vld [vmem:[%s220] sm:$0xff]
    %223 = vrot.lane.b32.xlu0 %v219, 64
    %v224 = vpop.permute.xlu0 %223
    %v226 = vsel %vm144, %v218, %v224
    %v227 = vld [vmem:[#allocation3 + $0xa0] sm:$0xff]
    %v228 = vld [vmem:[#allocation3 + $0xa8] sm:$0xff]
    %v229 = vld [vmem:[#allocation3 + $0xb0] sm:$0xff]
    %v230 = vld [vmem:[#allocation3 + $0xb8] sm:$0xff]
    %v231 = vld [vmem:[#allocation3 + $0xc0] sm:$0xff]
    %v232 = vld [vmem:[#allocation3 + $0xc8] sm:$0xff]
    %v233 = vld [vmem:[#allocation3 + $0xd0] sm:$0xff]
    %v234 = vld [vmem:[#allocation3 + $0xd8] sm:$0xff]
    %v235 = vld [vmem:[#allocation3 + $0xe0] sm:$0xff]
    %v236 = vld [vmem:[#allocation3 + $0xe8] sm:$0xff]
    %v237 = vld [vmem:[#allocation3 + $0xf0] sm:$0xff]
    %v238 = vld [vmem:[#allocation3 + $0xf8] sm:$0xff]
    %v239 = vld [vmem:[#allocation3 + $0x100] sm:$0xff]
    %v240 = vld [vmem:[#allocation3 + $0x108] sm:$0xff]
    %v241 = vld [vmem:[#allocation3 + $0x110] sm:$0xff]
    %v242 = vld [vmem:[#allocation3 + $0x118] sm:$0xff]
    %v243 = vld [vmem:[#allocation3 + $0x120] sm:$0xff]
    %v244 = vld [vmem:[#allocation3 + $0x128] sm:$0xff]
    %v245 = vld [vmem:[#allocation3 + $0x130] sm:$0xff]
    %v246 = vld [vmem:[#allocation3 + $0x138] sm:$0xff]
    %v247 = vld [vmem:[#allocation3 + $0x140] sm:$0xff]
    %v248 = vld [vmem:[#allocation3 + $0x148] sm:$0xff]
    %v249 = vld [vmem:[#allocation3 + $0x150] sm:$0xff]
    %v250 = vld [vmem:[#allocation3 + $0x158] sm:$0xff]
    %v251 = vld [vmem:[#allocation3 + $0x160] sm:$0xff]
    %v252 = vld [vmem:[#allocation3 + $0x168] sm:$0xff]
    %v253 = vld [vmem:[#allocation3 + $0x170] sm:$0xff]
    %v254 = vld [vmem:[#allocation3 + $0x178] sm:$0xff]
    %v255 = vld [vmem:[#allocation3 + $0x180] sm:$0xff]
    %v256 = vld [vmem:[#allocation3 + $0x188] sm:$0xff]
    %v257 = vld [vmem:[#allocation3 + $0x190] sm:$0xff]
    %v258 = vld [vmem:[#allocation3 + $0x198] sm:$0xff]
    %v260 = vlaneseq
    %v261 = vshrl.u32 %v260, 7
    %v262 = vsub.s32 0, %v261
    %v263 = vrot.slane %v44, %v262
    %v264 = vlaneseq
    %v265 = vshrl.u32 %v264, 7
    %v266 = vsub.s32 1, %v265
    %v267 = vrot.slane %v44, %v266
    %270 = vmatprep.subr.mxu0 %v258
    %271 = vmatpush1.msra.mxu0 %v257
    %272 = vmatprep.subr.mxu0 %v256
    %273 = vmatpush1.msra.mxu0 %v255
    %274 = vmatprep.subr.mxu0 %v254
    %275 = vmatpush1.msra.mxu0 %v253
    %276 = vmatprep.subr.mxu0 %v252
    %277 = vmatpush1.msra.mxu0 %v251
    %278 = vmatprep.subr.mxu0 %v250
    %279 = vmatpush1.msra.mxu0 %v249
    %280 = vmatprep.subr.mxu0 %v248
    %281 = vmatpush1.msra.mxu0 %v247
    %282 = vmatprep.subr.mxu0 %v246
    %283 = vmatpush1.msra.mxu0 %v245
    %284 = vmatprep.subr.mxu0 %v244
    %285 = vmatpush1.msra.mxu0 %v243
    %286 = vmatprep.subr.mxu0 %v242
    %287 = vmatpush1.msra.mxu0 %v241
    %288 = vmatprep.subr.mxu0 %v240
    %289 = vmatpush1.msra.mxu0 %v239
    %290 = vmatprep.subr.mxu0 %v238
    %291 = vmatpush1.msra.mxu0 %v237
    %292 = vmatprep.subr.mxu0 %v236
    %293 = vmatpush1.msra.mxu0 %v235
    %294 = vmatprep.subr.mxu0 %v234
    %295 = vmatpush1.msra.mxu0 %v233
    %296 = vmatprep.subr.mxu0 %v232
    %297 = vmatpush1.msra.mxu0 %v231
    %298 = vmatprep.subr.mxu0 %v230
    %299 = vmatpush1.msra.mxu0 %v229
    %300 = vmatprep.subr.mxu0 %v228
    %301 = vmatpush1.msra.mxu0 %v227
    %302 = vmatprep.subr.mxu0 0.0
    %303 = vmatpush2.msra.mxu0 0.0
    %304 = vmatprep.subr.mxu0 0.0
    %305 = vmatpush2.msra.mxu0 0.0
    %306 = vmatprep.subr.mxu0 0.0
    %307 = vmatpush2.msra.mxu0 0.0
    %308 = vmatprep.subr.mxu0 0.0
    %309 = vmatpush2.msra.mxu0 0.0
    %310 = vmatprep.subr.mxu0 0.0
    %311 = vmatpush2.msra.mxu0 0.0
    %312 = vmatprep.subr.mxu0 0.0
    %313 = vmatpush2.msra.mxu0 0.0
    %314 = vmatprep.subr.mxu0 0.0
    %315 = vmatpush2.msra.mxu0 0.0
    %316 = vmatprep.subr.mxu0 0.0
    %317 = vmatpush2.msra.mxu0 0.0
    %318 = vmatprep.subr.mxu0 0.0
    %319 = vmatpush2.msra.mxu0 0.0
    %320 = vmatprep.subr.mxu0 0.0
    %321 = vmatpush2.msra.mxu0 0.0
    %322 = vmatprep.subr.mxu0 0.0
    %323 = vmatpush2.msra.mxu0 0.0
    %324 = vmatprep.subr.mxu0 0.0
    %325 = vmatpush2.msra.mxu0 0.0
    %326 = vmatprep.subr.mxu0 0.0
    %327 = vmatpush2.msra.mxu0 0.0
    %328 = vmatprep.subr.mxu0 0.0
    %329 = vmatpush2.msra.mxu0 0.0
    %330 = vmatprep.subr.mxu0 0.0
    %331 = vmatpush2.msra.mxu0 0.0
    %332 = vmatprep.subr.mxu0 0.0
    %333 = vmatpush2.msra.mxu0 0.0
    %334 = vmatprep.mubr.f32.mxu0 0.0
    %335 = vmatmul.mubr.f32.gmra.mxu0 %v226
    %v336 = vpop.f32.mrf.mxu0
    %v337 = vadd.f32 %v263, %v336
    %v338 = vpop.f32.mrf.mxu0
    %v339 = vadd.f32 %v267, %v338
    %340 = vdwg.mxu0
    %v341 = vxor.u32 %v337, 2147483648
    %v342 = vmul.f32 %v341, 1.442695
    %v343 = vpow.pop %v342
    %v344 = vadd.f32 %v343, 1.0
    %v345 = vrcp.pop %v344
    %v346 = vmul.f32 1.0, %v345
    %v347 = vtanh.pop %v339
    %v348 = vxor.u32 %v339, 2147483648
    %v349 = vmul.f32 %v348, 1.442695
    %v350 = vpow.pop %v349
    %v351 = vadd.f32 %v350, 1.0
    %v352 = vrcp.pop %v351
    %v353 = vmul.f32 1.0, %v352
    %355 = vrot.lane.b32.xlu0 %v221, 64
    %v356 = vpop.permute.xlu0 %355
    %v358 = vmul.f32 %v346, %v356
    %v359 = vmul.f32 %v346, %v347
    %361 = vrot.lane.b32.xlu0 %v359, 64
    %v362 = vpop.permute.xlu0 %361
    %v364 = vadd.f32 %v358, %v362
    %v365 = vtanh.pop %v364
    %v366 = vmul.f32 %v353, %v365
    %368 = vrot.lane.b32.xlu0 %v366, 64
    %v369 = vpop.permute.xlu0 %368
    %371 = vst.msk [vmem:[#allocation2] sm:$0xff] %vm144, %v369
    %373 = vrot.lane.b32.xlu0 %v364, 64
    %v374 = vpop.permute.xlu0 %373
    %376 = vst.msk [vmem:[%s220] sm:$0xff] %vm144, %v374
    %v377 = vld [vmem:[#allocation3 + $0x1a0] sm:$0xff]
    %v378 = vld [vmem:[#allocation3 + $0x1b0] sm:$0xff]
    %v379 = vld [vmem:[#allocation3 + $0x1c0] sm:$0xff]
    %v380 = vld [vmem:[#allocation3 + $0x1d0] sm:$0xff]
    %v381 = vld [vmem:[#allocation3 + $0x1e0] sm:$0xff]
    %v382 = vld [vmem:[#allocation3 + $0x1f0] sm:$0xff]
    %v383 = vld [vmem:[#allocation3 + $0x200] sm:$0xff]
    %v384 = vld [vmem:[#allocation3 + $0x210] sm:$0xff]
    %v386 = vlaneseq
    %v387 = vshrl.u32 %v386, 7
    %v388 = vsub.s32 0, %v387
    %v389 = vrot.slane %v45, %v388
    %v391 = vsel %vm144, %v369, 0
    %393 = vmatprep.subr.mxu0 0.0
    %394 = vmatpush1.msra.mxu0 0.0
    %395 = vmatprep.subr.mxu0 0.0
    %396 = vmatpush1.msra.mxu0 0.0
    %397 = vmatprep.subr.mxu0 0.0
    %398 = vmatpush1.msra.mxu0 0.0
    %399 = vmatprep.subr.mxu0 0.0
    %400 = vmatpush1.msra.mxu0 0.0
    %401 = vmatprep.subr.mxu0 0.0
    %402 = vmatpush1.msra.mxu0 0.0
    %403 = vmatprep.subr.mxu0 0.0
    %404 = vmatpush1.msra.mxu0 0.0
    %405 = vmatprep.subr.mxu0 0.0
    %406 = vmatpush1.msra.mxu0 0.0
    %407 = vmatprep.subr.mxu0 0.0
    %408 = vmatpush1.msra.mxu0 0.0
    %409 = vmatprep.subr.mxu0 0.0
    %410 = vmatpush1.msra.mxu0 %v384
    %411 = vmatprep.subr.mxu0 0.0
    %412 = vmatpush1.msra.mxu0 %v383
    %413 = vmatprep.subr.mxu0 0.0
    %414 = vmatpush1.msra.mxu0 %v382
    %415 = vmatprep.subr.mxu0 0.0
    %416 = vmatpush1.msra.mxu0 %v381
    %417 = vmatprep.subr.mxu0 0.0
    %418 = vmatpush1.msra.mxu0 %v380
    %419 = vmatprep.subr.mxu0 0.0
    %420 = vmatpush1.msra.mxu0 %v379
    %421 = vmatprep.subr.mxu0 0.0
    %422 = vmatpush1.msra.mxu0 %v378
    %423 = vmatprep.subr.mxu0 0.0
    %424 = vmatpush1.msra.mxu0 %v377
    %425 = vmatprep.subr.mxu0 0.0
    %426 = vmatpush2.msra.mxu0 0.0
    %427 = vmatprep.subr.mxu0 0.0
    %428 = vmatpush2.msra.mxu0 0.0
    %429 = vmatprep.subr.mxu0 0.0
    %430 = vmatpush2.msra.mxu0 0.0
    %431 = vmatprep.subr.mxu0 0.0
    %432 = vmatpush2.msra.mxu0 0.0
    %433 = vmatprep.subr.mxu0 0.0
    %434 = vmatpush2.msra.mxu0 0.0
    %435 = vmatprep.subr.mxu0 0.0
    %436 = vmatpush2.msra.mxu0 0.0
    %437 = vmatprep.subr.mxu0 0.0
    %438 = vmatpush2.msra.mxu0 0.0
    %439 = vmatprep.subr.mxu0 0.0
    %440 = vmatpush2.msra.mxu0 0.0
    %441 = vmatprep.subr.mxu0 0.0
    %442 = vmatpush2.msra.mxu0 0.0
    %443 = vmatprep.subr.mxu0 0.0
    %444 = vmatpush2.msra.mxu0 0.0
    %445 = vmatprep.subr.mxu0 0.0
    %446 = vmatpush2.msra.mxu0 0.0
    %447 = vmatprep.subr.mxu0 0.0
    %448 = vmatpush2.msra.mxu0 0.0
    %449 = vmatprep.subr.mxu0 0.0
    %450 = vmatpush2.msra.mxu0 0.0
    %451 = vmatprep.subr.mxu0 0.0
    %452 = vmatpush2.msra.mxu0 0.0
    %453 = vmatprep.subr.mxu0 0.0
    %454 = vmatpush2.msra.mxu0 0.0
    %455 = vmatprep.subr.mxu0 0.0
    %456 = vmatpush2.msra.mxu0 0.0
    %457 = vmatprep.mubr.f32.mxu0 0.0
    %458 = vmatmul.mubr.f32.gmra.mxu0 %v391
    %v459 = vpop.f32.mrf.mxu0
    %v460 = vadd.f32 %v389, %v459
    %v461 = vpop.f32.mrf.mxu0
    %462 = vdwg.mxu0
    %463 = vst [vmem:[%s4] sm:$0xff] %v460
    // Predicated region
    $region26: #{lstm_policy_rollout.1} parent=1 // pred_check
      %p464 = pneg %p33
    $region27: #{lstm_policy_rollout.1} parent=1 // pred_check_branch
      %466 = sbr.rel (%p464) target = $region29
    $region28: #{lstm_policy_rollout.1} parent=1 // pred_region
      %v467 = vld [vmem:[#allocation2] sm:$0xff]
      %v468 = vld [vmem:[#allocation2 + $0x8] sm:$0xff]
      %469 = vst.msk [vmem:[%s5] sm:$0xff] %vm144, %v467
      %470 = vst.msk [vmem:[%s5 + $0x8] sm:$0xff] %vm144, %v468
    $region29: #{lstm_policy_rollout.1} parent=1 // pred_fallthru
      _
    // Predicated region
    $region30: #{lstm_policy_rollout.1} parent=1 // pred_check
      _
    $region31: #{lstm_policy_rollout.1} parent=1 // pred_check_branch
      %472 = sbr.rel (0) target = $region33
    $region32: #{lstm_policy_rollout.1} parent=1 // pred_region
      _
    $region33: #{lstm_policy_rollout.1} parent=1 // pred_fallthru
      _
    // Predicated region
    $region34: #{lstm_policy_rollout.1} parent=1 // pred_check
      _
    $region35: #{lstm_policy_rollout.1} parent=1 // pred_check_branch
      %474 = sbr.rel (0) target = $region37
    $region36: #{lstm_policy_rollout.1} parent=1 // pred_region
      _
    $region37: #{lstm_policy_rollout.1} parent=1 // pred_fallthru
      _
    // Predicated region
    $region38: #{lstm_policy_rollout.1} parent=1 // pred_check
      _
    $region39: #{lstm_policy_rollout.1} parent=1 // pred_check_branch
      %476 = sbr.rel (0) target = $region41
    $region40: #{lstm_policy_rollout.1} parent=1 // pred_region
      _
    $region41: #{lstm_policy_rollout.1} parent=1 // pred_fallthru
      _
    // Predicated region
    $region42: #{lstm_policy_rollout.1} parent=1 // pred_check
      _
    $region43: #{lstm_policy_rollout.1} parent=1 // pred_check_branch
      %478 = sbr.rel (0) target = $region45
    $region44: #{lstm_policy_rollout.1} parent=1 // pred_region
      _
    $region45: #{lstm_policy_rollout.1} parent=1 // pred_fallthru
      _
    %479 = vsyncpa [#allocation4], 1

</llo_original>
